<compile_context>
chip_gen: v5e
topology: v5e:2x2
jax: 0.10.0
libtpu: 0.0.40
codegen_flags: <defaults>
</compile_context>

<pallas_src>
import jax
import jax.numpy as jnp
from jax.experimental import pallas as pl
from jax.experimental.pallas import tpu as pltpu

LEAKY_SLOPE = 0.01  # torch.nn.LeakyReLU default negative_slope


def _leaky_relu(x):
    return jnp.where(x >= 0, x, LEAKY_SLOPE * x)


def _round_up(n, m):
    return (n + m - 1) // m * m


def perceptron_kernel(x_ref, w1_ref, b1_ref, w2_ref, b2_ref, w3_ref, b3_ref, o_ref):
    # x / W* arrive as bf16; every matmul accumulates in f32 on the MXU,
    # bias add + LeakyReLU are done in f32.
    h1 = jnp.dot(x_ref[...], w1_ref[...], preferred_element_type=jnp.float32) + b1_ref[...]
    h1 = _leaky_relu(h1)

    h2 = jnp.dot(h1.astype(jnp.bfloat16), w2_ref[...],
                 preferred_element_type=jnp.float32) + b2_ref[...]
    h2 = _leaky_relu(h2)

    out = jnp.dot(h2.astype(jnp.bfloat16), w3_ref[...],
                  preferred_element_type=jnp.float32) + b3_ref[...]
    o_ref[...] = out.astype(o_ref.dtype)


def perceptron_forward(x, params, *, batch_tile=256):
    """x: (B, dim_in) float32. params: W1,b1,W2,b2,W3,b3 (W stored (in, out))."""
    B, dim_in = x.shape
    H = params["W1"].shape[1]
    num_pixel = params["W3"].shape[1]

    # Lane-dense padding of feature dims (multiples of 128).
    Dp = _round_up(dim_in, 128)
    Hp = _round_up(H, 128)
    Pp = _round_up(num_pixel, 128)

    # Batch tile: multiple of 16 (bf16 sublane packing). TB=256 keeps
    # 2x double-buffered x/out tiles + resident weights + f32 h1/h2
    # temporaries comfortably inside every generation's scoped VMEM.
    TB = min(batch_tile, _round_up(B, 16))
    Bp = _round_up(B, TB)

    # Zero-pad once in the wrapper (padded rows/cols flow through
    # Linear + LeakyReLU as exact zeros and are sliced off at the end).
    f32, bf16 = jnp.float32, jnp.bfloat16
    xp = jnp.zeros((Bp, Dp), bf16).at[:B, :dim_in].set(x.astype(bf16))
    w1 = jnp.zeros((Dp, Hp), bf16).at[:dim_in, :H].set(params["W1"].astype(bf16))
    w2 = jnp.zeros((Hp, Hp), bf16).at[:H, :H].set(params["W2"].astype(bf16))
    w3 = jnp.zeros((Hp, Pp), bf16).at[:H, :num_pixel].set(params["W3"].astype(bf16))
    b1 = jnp.zeros((1, Hp), f32).at[:, :H].set(params["b1"])
    b2 = jnp.zeros((1, Hp), f32).at[:, :H].set(params["b2"])
    b3 = jnp.zeros((1, Pp), f32).at[:, :num_pixel].set(params["b3"])

    grid = (Bp // TB,)
    resident = lambda a: pl.BlockSpec(a.shape, lambda i: (0,) * a.ndim)

    flops = 2 * Bp * (Dp * Hp + Hp * Hp + Hp * Pp)
    bytes_accessed = (xp.size + w1.size + w2.size + w3.size) * 2 \
                     + (b1.size + b2.size + b3.size) * 4 + Bp * Pp * 4

    out_padded = pl.pallas_call(
        perceptron_kernel,
        out_shape=jax.ShapeDtypeStruct((Bp, Pp), jnp.float32),
        grid=grid,
        in_specs=[
            pl.BlockSpec((TB, Dp), lambda i: (i, 0)),   # x: batch-tiled, pipelined
            resident(w1), resident(b1),                 # weights/biases: VMEM-resident
            resident(w2), resident(b2),
            resident(w3), resident(b3),
        ],
        out_specs=pl.BlockSpec((TB, Pp), lambda i: (i, 0)),
        compiler_params=pltpu.CompilerParams(
            dimension_semantics=("parallel",),          # megacore-friendly batch axis
        ),
        cost_estimate=pl.CostEstimate(
            flops=flops, transcendentals=0, bytes_accessed=bytes_accessed),
    )(xp, w1, b1, w2, b2, w3, b3)

    return out_padded[:B, :num_pixel]


def init_params(key, dim_in, num_neurons, num_pixel):
    """Deterministic, torch.nn.Linear-style uniform(-1/sqrt(fan_in), 1/sqrt(fan_in))."""
    ks = jax.random.split(key, 6)

    def linear(kw, kb, fan_in, fan_out):
        bound = 1.0 / jnp.sqrt(jnp.float32(fan_in))
        W = jax.random.uniform(kw, (fan_in, fan_out), jnp.float32, -bound, bound)
        b = jax.random.uniform(kb, (1, fan_out), jnp.float32, -bound, bound)
        return W, b

    W1, b1 = linear(ks[0], ks[1], dim_in, num_neurons)
    W2, b2 = linear(ks[2], ks[3], num_neurons, num_neurons)
    W3, b3 = linear(ks[4], ks[5], num_neurons, num_pixel)
    return {"W1": W1, "b1": b1, "W2": W2, "b2": b2, "W3": W3, "b3": b3}


def reference_forward(x, p):
    """Pure-JAX reference using the same bf16-input / f32-accumulate recipe."""
    bf16 = jnp.bfloat16
    h1 = _leaky_relu(
        jnp.dot(x.astype(bf16), p["W1"].astype(bf16),
                preferred_element_type=jnp.float32) + p["b1"])
    h2 = _leaky_relu(
        jnp.dot(h1.astype(bf16), p["W2"].astype(bf16),
                preferred_element_type=jnp.float32) + p["b2"])
    return jnp.dot(h2.astype(bf16), p["W3"].astype(bf16),
                   preferred_element_type=jnp.float32) + p["b3"]


if __name__ == "__main__":
    key = jax.random.PRNGKey(0)
    k_x, k_p = jax.random.split(key)

    B, dim_in, num_neurons, num_pixel = 8, 32, 64, 16

    x = jax.random.normal(k_x, (B, dim_in), dtype=jnp.float32)
    params = init_params(k_p, dim_in, num_neurons, num_pixel)

    out = perceptron_forward(x, params)
    out = jax.block_until_ready(out)

    ref = reference_forward(x, params)
    assert out.shape == (B, num_pixel)
    assert jnp.allclose(out, ref, atol=1e-2, rtol=1e-2), \
        f"max abs err {jnp.max(jnp.abs(out - ref))}"

    print("KERNEL_OK")
</pallas_src>

<mosaic_0001>
module attributes {stable_mosaic.version = 11 : i64} {
  func.func @perceptron_kernel(%arg0: i32, %arg1: memref<16x128xbf16, #tpu.memory_space<vmem>>, %arg2: memref<128x128xbf16, #tpu.memory_space<vmem>>, %arg3: memref<1x128xf32, #tpu.memory_space<vmem>>, %arg4: memref<128x128xbf16, #tpu.memory_space<vmem>>, %arg5: memref<1x128xf32, #tpu.memory_space<vmem>>, %arg6: memref<128x128xbf16, #tpu.memory_space<vmem>>, %arg7: memref<1x128xf32, #tpu.memory_space<vmem>>, %arg8: memref<16x128xf32, #tpu.memory_space<vmem>>) attributes {dimension_semantics = [#tpu.dimension_semantics<parallel>], iteration_bounds = array<i64: 1>, scalar_prefetch = 0 : i64, scratch_operands = 0 : i64, tpu.core_type = #tpu.core_type<tc>, window_params = [{transform_indices = @transform_0, window_bounds = array<i64: 16, 128>}, {pipeline_mode = #tpu.pipeline_mode<synchronous>, transform_indices = @transform_1, window_bounds = array<i64: 128, 128>}, {pipeline_mode = #tpu.pipeline_mode<synchronous>, transform_indices = @transform_2, window_bounds = array<i64: 1, 128>}, {pipeline_mode = #tpu.pipeline_mode<synchronous>, transform_indices = @transform_3, window_bounds = array<i64: 128, 128>}, {pipeline_mode = #tpu.pipeline_mode<synchronous>, transform_indices = @transform_4, window_bounds = array<i64: 1, 128>}, {pipeline_mode = #tpu.pipeline_mode<synchronous>, transform_indices = @transform_5, window_bounds = array<i64: 128, 128>}, {pipeline_mode = #tpu.pipeline_mode<synchronous>, transform_indices = @transform_6, window_bounds = array<i64: 1, 128>}, {transform_indices = @transform_7, window_bounds = array<i64: 16, 128>}]} {
    %c0 = arith.constant 0 : index
    %c0_0 = arith.constant 0 : index
    %0 = vector.load %arg1[%c0, %c0_0] : memref<16x128xbf16, #tpu.memory_space<vmem>>, vector<16x128xbf16>
    %c0_1 = arith.constant 0 : index
    %c0_2 = arith.constant 0 : index
    %1 = vector.load %arg2[%c0_1, %c0_2] : memref<128x128xbf16, #tpu.memory_space<vmem>>, vector<128x128xbf16>
    %cst = arith.constant dense<0.000000e+00> : vector<16x128xf32>
    %2 = tpu.matmul %0, %1, %cst {dimension_numbers = #tpu.dot_dimension_numbers<[1], [0], [0], [1], [0, 0, 1, 1], [], []>} : vector<16x128xbf16>, vector<128x128xbf16>, vector<16x128xf32> -> vector<16x128xf32>
    %c0_3 = arith.constant 0 : index
    %c0_4 = arith.constant 0 : index
    %3 = vector.load %arg3[%c0_3, %c0_4] : memref<1x128xf32, #tpu.memory_space<vmem>>, vector<1x128xf32>
    %4 = vector.broadcast %3 : vector<1x128xf32> to vector<16x128xf32>
    %5 = arith.addf %2, %4 : vector<16x128xf32>
    %cst_5 = arith.constant 0.000000e+00 : f32
    %6 = vector.broadcast %cst_5 : f32 to vector<16x128xf32>
    %7 = arith.cmpf oge, %5, %6 : vector<16x128xf32>
    %cst_6 = arith.constant 0.00999999977 : f32
    %8 = vector.broadcast %cst_6 : f32 to vector<16x128xf32>
    %9 = arith.mulf %8, %5 : vector<16x128xf32>
    %10 = arith.select %7, %5, %9 : vector<16x128xi1>, vector<16x128xf32>
    %11 = arith.truncf %10 : vector<16x128xf32> to vector<16x128xbf16>
    %c0_7 = arith.constant 0 : index
    %c0_8 = arith.constant 0 : index
    %12 = vector.load %arg4[%c0_7, %c0_8] : memref<128x128xbf16, #tpu.memory_space<vmem>>, vector<128x128xbf16>
    %cst_9 = arith.constant dense<0.000000e+00> : vector<16x128xf32>
    %13 = tpu.matmul %11, %12, %cst_9 {dimension_numbers = #tpu.dot_dimension_numbers<[1], [0], [0], [1], [0, 0, 1, 1], [], []>} : vector<16x128xbf16>, vector<128x128xbf16>, vector<16x128xf32> -> vector<16x128xf32>
    %c0_10 = arith.constant 0 : index
    %c0_11 = arith.constant 0 : index
    %14 = vector.load %arg5[%c0_10, %c0_11] : memref<1x128xf32, #tpu.memory_space<vmem>>, vector<1x128xf32>
    %15 = vector.broadcast %14 : vector<1x128xf32> to vector<16x128xf32>
    %16 = arith.addf %13, %15 : vector<16x128xf32>
    %cst_12 = arith.constant 0.000000e+00 : f32
    %17 = vector.broadcast %cst_12 : f32 to vector<16x128xf32>
    %18 = arith.cmpf oge, %16, %17 : vector<16x128xf32>
    %cst_13 = arith.constant 0.00999999977 : f32
    %19 = vector.broadcast %cst_13 : f32 to vector<16x128xf32>
    %20 = arith.mulf %19, %16 : vector<16x128xf32>
    %21 = arith.select %18, %16, %20 : vector<16x128xi1>, vector<16x128xf32>
    %22 = arith.truncf %21 : vector<16x128xf32> to vector<16x128xbf16>
    %c0_14 = arith.constant 0 : index
    %c0_15 = arith.constant 0 : index
    %23 = vector.load %arg6[%c0_14, %c0_15] : memref<128x128xbf16, #tpu.memory_space<vmem>>, vector<128x128xbf16>
    %cst_16 = arith.constant dense<0.000000e+00> : vector<16x128xf32>
    %24 = tpu.matmul %22, %23, %cst_16 {dimension_numbers = #tpu.dot_dimension_numbers<[1], [0], [0], [1], [0, 0, 1, 1], [], []>} : vector<16x128xbf16>, vector<128x128xbf16>, vector<16x128xf32> -> vector<16x128xf32>
    %c0_17 = arith.constant 0 : index
    %c0_18 = arith.constant 0 : index
    %25 = vector.load %arg7[%c0_17, %c0_18] : memref<1x128xf32, #tpu.memory_space<vmem>>, vector<1x128xf32>
    %26 = vector.broadcast %25 : vector<1x128xf32> to vector<16x128xf32>
    %27 = arith.addf %24, %26 : vector<16x128xf32>
    %c0_19 = arith.constant 0 : index
    %c0_20 = arith.constant 0 : index
    %28 = vector.load %arg8[%c0_19, %c0_20] : memref<16x128xf32, #tpu.memory_space<vmem>>, vector<16x128xf32>
    tpu.vector_store %arg8[%c0_19, %c0_20], %27 {strides = array<i32>} : memref<16x128xf32, #tpu.memory_space<vmem>>, vector<16x128xf32>,
    return
  }
  func.func @transform_0(%arg0: i32) -> (i32, i32) {
    %c0_i32 = arith.constant 0 : i32
    %c0_i32_0 = arith.constant 0 : i32
    return %arg0, %c0_i32 : i32, i32
  }
  func.func @transform_1(%arg0: i32) -> (i32, i32) {
    %c0_i32 = arith.constant 0 : i32
    %c0_i32_0 = arith.constant 0 : i32
    %c0_i32_1 = arith.constant 0 : i32
    return %c0_i32, %c0_i32_0 : i32, i32
  }
  func.func @transform_2(%arg0: i32) -> (i32, i32) {
    %c0_i32 = arith.constant 0 : i32
    %c0_i32_0 = arith.constant 0 : i32
    %c0_i32_1 = arith.constant 0 : i32
    return %c0_i32, %c0_i32_0 : i32, i32
  }
  func.func @transform_3(%arg0: i32) -> (i32, i32) {
    %c0_i32 = arith.constant 0 : i32
    %c0_i32_0 = arith.constant 0 : i32
    %c0_i32_1 = arith.constant 0 : i32
    return %c0_i32, %c0_i32_0 : i32, i32
  }
  func.func @transform_4(%arg0: i32) -> (i32, i32) {
    %c0_i32 = arith.constant 0 : i32
    %c0_i32_0 = arith.constant 0 : i32
    %c0_i32_1 = arith.constant 0 : i32
    return %c0_i32, %c0_i32_0 : i32, i32
  }
  func.func @transform_5(%arg0: i32) -> (i32, i32) {
    %c0_i32 = arith.constant 0 : i32
    %c0_i32_0 = arith.constant 0 : i32
    %c0_i32_1 = arith.constant 0 : i32
    return %c0_i32, %c0_i32_0 : i32, i32
  }
  func.func @transform_6(%arg0: i32) -> (i32, i32) {
    %c0_i32 = arith.constant 0 : i32
    %c0_i32_0 = arith.constant 0 : i32
    %c0_i32_1 = arith.constant 0 : i32
    return %c0_i32, %c0_i32_0 : i32, i32
  }
  func.func @transform_7(%arg0: i32) -> (i32, i32) {
    %c0_i32 = arith.constant 0 : i32
    %c0_i32_0 = arith.constant 0 : i32
    return %arg0, %c0_i32 : i32, i32
  }
}

</mosaic_0001>

<llo_original>
// kernel: tpu_custom_call.1
$region0: #{tpu_custom_call.1}
  #allocation0 [shape = 'u32[]', space=smem, size = 0x4, offset = 0x4, fixed_abs, tag = 'smem constant byte address 0x4 - core index']
  #allocation1 [shape = 'u32[72,128]{1,0:T(1,128)}', space=vmem, size = 0x9000, scoped, tag = 'internal scratch']
  %s0 = inlined_call_operand.hbm [shape: bf16[16,128], index: 0, kind: input, shape index: {}]
  %s1 = inlined_call_operand.hbm [shape: bf16[128,128], index: 1, kind: input, shape index: {}]
  %s2 = inlined_call_operand.vmem [shape: f32[1,128], index: 2, kind: input, shape index: {}]
  %s3 = inlined_call_operand.hbm [shape: bf16[128,128], index: 3, kind: input, shape index: {}]
  %s4 = inlined_call_operand.vmem [shape: f32[1,128], index: 4, kind: input, shape index: {}]
  %s5 = inlined_call_operand.hbm [shape: bf16[128,128], index: 5, kind: input, shape index: {}]
  %s6 = inlined_call_operand.vmem [shape: f32[1,128], index: 6, kind: input, shape index: {}]
  %s7 = inlined_call_operand.hbm [shape: f32[16,128], index: 7, kind: output, shape index: {}]
  %s8 = sld [smem:[#allocation0]]
  $region54: #{tpu_custom_call.1} parent=0
    _
  %s10 = ssub.s32 1, %s8
  %s11 = scalar_select 0, %s10, %s8
  $region1: #{tpu_custom_call.1} parent=0
    #allocation2 [shape = 'u8[4096]{0}', space=vmem, size = 0x1000, scoped, tag = 'input window, operand 0, single buffered']
    #allocation3 [shape = 's32[1]{0}', space=sflag, size = 0x4, scoped, tag = 'scoped memory for tpu_custom_call.1']
    #allocation4 [shape = 's32[1]{0}', space=sflag, size = 0x4, scoped, tag = 'scoped memory for tpu_custom_call.1']
    #allocation5 [shape = 'u8[32768]{0}', space=vmem, size = 0x8000, scoped, tag = 'input window, operand 1, single buffered']
    #allocation6 [shape = 's32[1]{0}', space=sflag, size = 0x4, scoped, tag = 'scoped memory for tpu_custom_call.1']
    #allocation7 [shape = 'u8[32768]{0}', space=vmem, size = 0x8000, scoped, tag = 'input window, operand 3, single buffered']
    #allocation8 [shape = 'u8[32768]{0}', space=vmem, size = 0x8000, scoped, tag = 'input window, operand 5, single buffered']
    #allocation9 [shape = 's32[1]{0}', space=sflag, size = 0x4, scoped, tag = 'scoped memory for tpu_custom_call.1']
    #allocation10 [shape = 'u8[8192]{0}', space=vmem, size = 0x2000, scoped, tag = 'output window, operand 0, single buffered']
    %12 = vsyncpa [#allocation3], 0
    %13 = vsyncpa [#allocation6], 0
    %14 = vsyncpa [#allocation9], 0
    %15 = vsyncpa [#allocation4], 0
    // Predicated region
    $region2: #{tpu_custom_call.1} parent=1 // pred_check
      _
    $region3: #{tpu_custom_call.1} parent=1 // pred_check_branch
      %17 = sbr.rel (0) target = $region5
    $region4: #{tpu_custom_call.1} parent=1 // pred_region
      %19 = vsyncadd [#allocation3], 0
      %s20 = sshll.u32 %s0, 4
      %s21 = int_to_ptr.hbm [resolvable:$true] %s20
      %s22 = sshll.u32 [#allocation2], 4
      %s23 = int_to_ptr.vmem [resolvable:$true] %s22
      %28 = dma.hbm_to_vmem [thread:$0]  %s21, 128, %s23, [#allocation3], 64, 64, 4
    $region5: #{tpu_custom_call.1} parent=1 // pred_fallthru
      _
    // Predicated region
    $region6: #{tpu_custom_call.1} parent=1 // pred_check
      _
    $region7: #{tpu_custom_call.1} parent=1 // pred_check_branch
      %30 = sbr.rel (0) target = $region9
    $region8: #{tpu_custom_call.1} parent=1 // pred_region
      %32 = vsyncadd [#allocation6], 0
      %s33 = sshll.u32 %s1, 4
      %s34 = int_to_ptr.hbm [resolvable:$true] %s33
      %s35 = sshll.u32 [#allocation5], 4
      %s36 = int_to_ptr.vmem [resolvable:$true] %s35
      %41 = dma.hbm_to_vmem [thread:$0]  %s34, 1024, %s36, [#allocation6], 64, 64, 4
    $region9: #{tpu_custom_call.1} parent=1 // pred_fallthru
      _
    // Predicated region
    $region10: #{tpu_custom_call.1} parent=1 // pred_check
      _
    $region11: #{tpu_custom_call.1} parent=1 // pred_check_branch
      %43 = sbr.rel (0) target = $region13
    $region12: #{tpu_custom_call.1} parent=1 // pred_region
      _
    $region13: #{tpu_custom_call.1} parent=1 // pred_fallthru
      _
    // Predicated region
    $region14: #{tpu_custom_call.1} parent=1 // pred_check
      _
    $region15: #{tpu_custom_call.1} parent=1 // pred_check_branch
      %45 = sbr.rel (0) target = $region17
    $region16: #{tpu_custom_call.1} parent=1 // pred_region
      %47 = vsyncadd [#allocation6], 0
      %s48 = sshll.u32 %s3, 4
      %s49 = int_to_ptr.hbm [resolvable:$true] %s48
      %s50 = sshll.u32 [#allocation7], 4
      %s51 = int_to_ptr.vmem [resolvable:$true] %s50
      %56 = dma.hbm_to_vmem [thread:$0]  %s49, 1024, %s51, [#allocation6], 64, 64, 4
    $region17: #{tpu_custom_call.1} parent=1 // pred_fallthru
      _
    // Predicated region
    $region18: #{tpu_custom_call.1} parent=1 // pred_check
      _
    $region19: #{tpu_custom_call.1} parent=1 // pred_check_branch
      %58 = sbr.rel (0) target = $region21
    $region20: #{tpu_custom_call.1} parent=1 // pred_region
      _
    $region21: #{tpu_custom_call.1} parent=1 // pred_fallthru
      _
    // Predicated region
    $region22: #{tpu_custom_call.1} parent=1 // pred_check
      _
    $region23: #{tpu_custom_call.1} parent=1 // pred_check_branch
      %60 = sbr.rel (0) target = $region25
    $region24: #{tpu_custom_call.1} parent=1 // pred_region
      %62 = vsyncadd [#allocation9], 0
      %s63 = sshll.u32 %s5, 4
      %s64 = int_to_ptr.hbm [resolvable:$true] %s63
      %s65 = sshll.u32 [#allocation8], 4
      %s66 = int_to_ptr.vmem [resolvable:$true] %s65
      %71 = dma.hbm_to_vmem [thread:$0]  %s64, 1024, %s66, [#allocation9], 64, 64, 4
    $region25: #{tpu_custom_call.1} parent=1 // pred_fallthru
      _
    // Predicated region
    $region26: #{tpu_custom_call.1} parent=1 // pred_check
      _
    $region27: #{tpu_custom_call.1} parent=1 // pred_check_branch
      %73 = sbr.rel (0) target = $region29
    $region28: #{tpu_custom_call.1} parent=1 // pred_region
      _
    $region29: #{tpu_custom_call.1} parent=1 // pred_fallthru
      _
    // Predicated region
    $region30: #{tpu_custom_call.1} parent=1 // pred_check
      _
    $region31: #{tpu_custom_call.1} parent=1 // pred_check_branch
      %75 = sbr.rel (0) target = $region33
    $region32: #{tpu_custom_call.1} parent=1 // pred_region
      %77 = dma.done [#allocation3], 128
    $region33: #{tpu_custom_call.1} parent=1 // pred_fallthru
      _
    // Predicated region
    $region34: #{tpu_custom_call.1} parent=1 // pred_check
      _
    $region35: #{tpu_custom_call.1} parent=1 // pred_check_branch
      %79 = sbr.rel (0) target = $region37
    $region36: #{tpu_custom_call.1} parent=1 // pred_region
      %81 = dma.done [#allocation6], 1024
    $region37: #{tpu_custom_call.1} parent=1 // pred_fallthru
      _
    // Predicated region
    $region38: #{tpu_custom_call.1} parent=1 // pred_check
      _
    $region39: #{tpu_custom_call.1} parent=1 // pred_check_branch
      %83 = sbr.rel (0) target = $region41
    $region40: #{tpu_custom_call.1} parent=1 // pred_region
      %85 = dma.done [#allocation6], 1024
    $region41: #{tpu_custom_call.1} parent=1 // pred_fallthru
      _
    // Predicated region
    $region42: #{tpu_custom_call.1} parent=1 // pred_check
      _
    $region43: #{tpu_custom_call.1} parent=1 // pred_check_branch
      %87 = sbr.rel (0) target = $region45
    $region44: #{tpu_custom_call.1} parent=1 // pred_region
      %89 = dma.done [#allocation9], 1024
    $region45: #{tpu_custom_call.1} parent=1 // pred_fallthru
      _
    %v90 = vld [vmem:[#allocation2] sm:$0xf]
    %v91 = vld [vmem:[#allocation2 + $0x4] sm:$0xf]
    %v92 = vld [vmem:[#allocation5] sm:$0xf]
    %v93 = vld [vmem:[#allocation5 + $0x4] sm:$0xf]
    %v94 = vld [vmem:[#allocation5 + $0x8] sm:$0xf]
    %v95 = vld [vmem:[#allocation5 + $0xc] sm:$0xf]
    %v96 = vld [vmem:[#allocation5 + $0x10] sm:$0xf]
    %v97 = vld [vmem:[#allocation5 + $0x14] sm:$0xf]
    %v98 = vld [vmem:[#allocation5 + $0x18] sm:$0xf]
    %v99 = vld [vmem:[#allocation5 + $0x1c] sm:$0xf]
    %v100 = vld [vmem:[#allocation5 + $0x20] sm:$0xf]
    %v101 = vld [vmem:[#allocation5 + $0x24] sm:$0xf]
    %v102 = vld [vmem:[#allocation5 + $0x28] sm:$0xf]
    %v103 = vld [vmem:[#allocation5 + $0x2c] sm:$0xf]
    %v104 = vld [vmem:[#allocation5 + $0x30] sm:$0xf]
    %v105 = vld [vmem:[#allocation5 + $0x34] sm:$0xf]
    %v106 = vld [vmem:[#allocation5 + $0x38] sm:$0xf]
    %v107 = vld [vmem:[#allocation5 + $0x3c] sm:$0xf]
    %v108 = vld [vmem:[%s2] sm:$0x1]
    %v110 = vperm.slane %v108, 0
    %v114 = vunpack.c.l.b16 %v90
    %v115 = vunpack.c.l.b16 %v91
    %v116 = vpack.c.b16 %v115, %v114
    %v134 = vunpack.c.l.b16 %v92
    %v135 = vunpack.c.l.b16 %v93
    %v136 = vunpack.c.l.b16 %v94
    %v137 = vunpack.c.l.b16 %v95
    %v138 = vunpack.c.l.b16 %v96
    %v139 = vunpack.c.l.b16 %v97
    %v140 = vunpack.c.l.b16 %v98
    %v141 = vunpack.c.l.b16 %v99
    %v142 = vunpack.c.l.b16 %v100
    %v143 = vunpack.c.l.b16 %v101
    %v144 = vunpack.c.l.b16 %v102
    %v145 = vunpack.c.l.b16 %v103
    %v146 = vunpack.c.l.b16 %v104
    %v147 = vunpack.c.l.b16 %v105
    %v148 = vunpack.c.l.b16 %v106
    %v149 = vunpack.c.l.b16 %v107
    %v150 = vpack.c.b16 %v135, %v134
    %v151 = vpack.c.b16 %v137, %v136
    %v152 = vpack.c.b16 %v139, %v138
    %v153 = vpack.c.b16 %v141, %v140
    %v154 = vpack.c.b16 %v143, %v142
    %v155 = vpack.c.b16 %v145, %v144
    %v156 = vpack.c.b16 %v147, %v146
    %v157 = vpack.c.b16 %v149, %v148
    %166 = vmatpush.bf16.msra.mxu0 %v157
    %167 = vmatpush.bf16.msra.mxu0 %v156
    %168 = vmatpush.bf16.msra.mxu0 %v155
    %169 = vmatpush.bf16.msra.mxu0 %v154
    %170 = vmatpush.bf16.msra.mxu0 %v153
    %171 = vmatpush.bf16.msra.mxu0 %v152
    %172 = vmatpush.bf16.msra.mxu0 %v151
    %173 = vmatpush.bf16.msra.mxu0 %v150
    %174 = vmatmul.bf16.gmra.mxu0 %v116
    %v175 = vpop.f32.mrf.mxu0
    %v176 = vadd.f32 %v110, %v175
    %v177 = vpop.f32.mrf.mxu0
    %v178 = vadd.f32 %v110, %v177
    %179 = vdwg.mxu0
    %vm180 = vcmp.ge.f32.partialorder %v176, 0.0
    %vm181 = vcmp.ge.f32.partialorder %v178, 0.0
    %v182 = vmul.f32 %v176, 0.01
    %v183 = vmul.f32 %v178, 0.01
    %v184 = vsel %vm180, %v176, %v182
    %v185 = vsel %vm181, %v178, %v183
    %v186 = vpack.c.bf16 %v185, %v184
    %v187 = vld [vmem:[#allocation7] sm:$0xf]
    %v188 = vld [vmem:[#allocation7 + $0x4] sm:$0xf]
    %v189 = vld [vmem:[#allocation7 + $0x8] sm:$0xf]
    %v190 = vld [vmem:[#allocation7 + $0xc] sm:$0xf]
    %v191 = vld [vmem:[#allocation7 + $0x10] sm:$0xf]
    %v192 = vld [vmem:[#allocation7 + $0x14] sm:$0xf]
    %v193 = vld [vmem:[#allocation7 + $0x18] sm:$0xf]
    %v194 = vld [vmem:[#allocation7 + $0x1c] sm:$0xf]
    %v195 = vld [vmem:[#allocation7 + $0x20] sm:$0xf]
    %v196 = vld [vmem:[#allocation7 + $0x24] sm:$0xf]
    %v197 = vld [vmem:[#allocation7 + $0x28] sm:$0xf]
    %v198 = vld [vmem:[#allocation7 + $0x2c] sm:$0xf]
    %v199 = vld [vmem:[#allocation7 + $0x30] sm:$0xf]
    %v200 = vld [vmem:[#allocation7 + $0x34] sm:$0xf]
    %v201 = vld [vmem:[#allocation7 + $0x38] sm:$0xf]
    %v202 = vld [vmem:[#allocation7 + $0x3c] sm:$0xf]
    %v203 = vld [vmem:[%s4] sm:$0x1]
    %v205 = vperm.slane %v203, 0
    %v223 = vunpack.c.l.b16 %v187
    %v224 = vunpack.c.l.b16 %v188
    %v225 = vunpack.c.l.b16 %v189
    %v226 = vunpack.c.l.b16 %v190
    %v227 = vunpack.c.l.b16 %v191
    %v228 = vunpack.c.l.b16 %v192
    %v229 = vunpack.c.l.b16 %v193
    %v230 = vunpack.c.l.b16 %v194
    %v231 = vunpack.c.l.b16 %v195
    %v232 = vunpack.c.l.b16 %v196
    %v233 = vunpack.c.l.b16 %v197
    %v234 = vunpack.c.l.b16 %v198
    %v235 = vunpack.c.l.b16 %v199
    %v236 = vunpack.c.l.b16 %v200
    %v237 = vunpack.c.l.b16 %v201
    %v238 = vunpack.c.l.b16 %v202
    %v239 = vpack.c.b16 %v224, %v223
    %v240 = vpack.c.b16 %v226, %v225
    %v241 = vpack.c.b16 %v228, %v227
    %v242 = vpack.c.b16 %v230, %v229
    %v243 = vpack.c.b16 %v232, %v231
    %v244 = vpack.c.b16 %v234, %v233
    %v245 = vpack.c.b16 %v236, %v235
    %v246 = vpack.c.b16 %v238, %v237
    %255 = vmatpush.bf16.msra.mxu0 %v246
    %256 = vmatpush.bf16.msra.mxu0 %v245
    %257 = vmatpush.bf16.msra.mxu0 %v244
    %258 = vmatpush.bf16.msra.mxu0 %v243
    %259 = vmatpush.bf16.msra.mxu0 %v242
    %260 = vmatpush.bf16.msra.mxu0 %v241
    %261 = vmatpush.bf16.msra.mxu0 %v240
    %262 = vmatpush.bf16.msra.mxu0 %v239
    %263 = vmatmul.bf16.gmra.mxu0 %v186
    %v264 = vpop.f32.mrf.mxu0
    %v265 = vadd.f32 %v205, %v264
    %v266 = vpop.f32.mrf.mxu0
    %v267 = vadd.f32 %v205, %v266
    %268 = vdwg.mxu0
    %vm269 = vcmp.ge.f32.partialorder %v265, 0.0
    %vm270 = vcmp.ge.f32.partialorder %v267, 0.0
    %v271 = vmul.f32 %v265, 0.01
    %v272 = vmul.f32 %v267, 0.01
    %v273 = vsel %vm269, %v265, %v271
    %v274 = vsel %vm270, %v267, %v272
    %v275 = vpack.c.bf16 %v274, %v273
    %v276 = vld [vmem:[#allocation8] sm:$0xf]
    %v277 = vld [vmem:[#allocation8 + $0x4] sm:$0xf]
    %v278 = vld [vmem:[#allocation8 + $0x8] sm:$0xf]
    %v279 = vld [vmem:[#allocation8 + $0xc] sm:$0xf]
    %v280 = vld [vmem:[#allocation8 + $0x10] sm:$0xf]
    %v281 = vld [vmem:[#allocation8 + $0x14] sm:$0xf]
    %v282 = vld [vmem:[#allocation8 + $0x18] sm:$0xf]
    %v283 = vld [vmem:[#allocation8 + $0x1c] sm:$0xf]
    %v284 = vld [vmem:[#allocation8 + $0x20] sm:$0xf]
    %v285 = vld [vmem:[#allocation8 + $0x24] sm:$0xf]
    %v286 = vld [vmem:[#allocation8 + $0x28] sm:$0xf]
    %v287 = vld [vmem:[#allocation8 + $0x2c] sm:$0xf]
    %v288 = vld [vmem:[#allocation8 + $0x30] sm:$0xf]
    %v289 = vld [vmem:[#allocation8 + $0x34] sm:$0xf]
    %v290 = vld [vmem:[#allocation8 + $0x38] sm:$0xf]
    %v291 = vld [vmem:[#allocation8 + $0x3c] sm:$0xf]
    %v292 = vld [vmem:[%s6] sm:$0x1]
    %v294 = vperm.slane %v292, 0
    %v312 = vunpack.c.l.b16 %v276
    %v313 = vunpack.c.l.b16 %v277
    %v314 = vunpack.c.l.b16 %v278
    %v315 = vunpack.c.l.b16 %v279
    %v316 = vunpack.c.l.b16 %v280
    %v317 = vunpack.c.l.b16 %v281
    %v318 = vunpack.c.l.b16 %v282
    %v319 = vunpack.c.l.b16 %v283
    %v320 = vunpack.c.l.b16 %v284
    %v321 = vunpack.c.l.b16 %v285
    %v322 = vunpack.c.l.b16 %v286
    %v323 = vunpack.c.l.b16 %v287
    %v324 = vunpack.c.l.b16 %v288
    %v325 = vunpack.c.l.b16 %v289
    %v326 = vunpack.c.l.b16 %v290
    %v327 = vunpack.c.l.b16 %v291
    %v328 = vpack.c.b16 %v313, %v312
    %v329 = vpack.c.b16 %v315, %v314
    %v330 = vpack.c.b16 %v317, %v316
    %v331 = vpack.c.b16 %v319, %v318
    %v332 = vpack.c.b16 %v321, %v320
    %v333 = vpack.c.b16 %v323, %v322
    %v334 = vpack.c.b16 %v325, %v324
    %v335 = vpack.c.b16 %v327, %v326
    %344 = vmatpush.bf16.msra.mxu0 %v335
    %345 = vmatpush.bf16.msra.mxu0 %v334
    %346 = vmatpush.bf16.msra.mxu0 %v333
    %347 = vmatpush.bf16.msra.mxu0 %v332
    %348 = vmatpush.bf16.msra.mxu0 %v331
    %349 = vmatpush.bf16.msra.mxu0 %v330
    %350 = vmatpush.bf16.msra.mxu0 %v329
    %351 = vmatpush.bf16.msra.mxu0 %v328
    %352 = vmatmul.bf16.gmra.mxu0 %v275
    %v353 = vpop.f32.mrf.mxu0
    %v354 = vadd.f32 %v294, %v353
    %v355 = vpop.f32.mrf.mxu0
    %v356 = vadd.f32 %v294, %v355
    %357 = vdwg.mxu0
    %358 = vst [vmem:[#allocation10] sm:$0xff] %v354
    %359 = vst [vmem:[#allocation10 + $0x8] sm:$0xff] %v356
    // Predicated region
    $region46: #{tpu_custom_call.1} parent=1 // pred_check
      _
    $region47: #{tpu_custom_call.1} parent=1 // pred_check_branch
      %361 = sbr.rel (0) target = $region49
    $region48: #{tpu_custom_call.1} parent=1 // pred_region
      %363 = vsyncadd [#allocation4], 0
      %s364 = sshll.u32 [#allocation10], 4
      %s365 = int_to_ptr.vmem [resolvable:$true] %s364
      %s366 = sshll.u32 %s7, 4
      %s367 = int_to_ptr.hbm [resolvable:$true] %s366
      %372 = dma.vmem_to_hbm [thread:$0]  %s365, 256, %s367, [#allocation4], 128, 128, 8
    $region49: #{tpu_custom_call.1} parent=1 // pred_fallthru
      _
    // Predicated region
    $region50: #{tpu_custom_call.1} parent=1 // pred_check
      _
    $region51: #{tpu_custom_call.1} parent=1 // pred_check_branch
      %374 = sbr.rel (0) target = $region53
    $region52: #{tpu_custom_call.1} parent=1 // pred_region
      %376 = dma.done [#allocation4], 256
    $region53: #{tpu_custom_call.1} parent=1 // pred_fallthru
      _
    %377 = vsyncpa [#allocation3], 1
    %378 = vsyncpa [#allocation6], 1
    %379 = vsyncpa [#allocation9], 1
    %380 = vsyncpa [#allocation4], 1

</llo_original>
